<compile_context>
chip_gen: v7x
topology: tpu7x:2x2x1
jax: 0.10.0
libtpu: 0.0.40
codegen_flags: <defaults>
</compile_context>

<pallas_src>
import functools

import jax
import jax.numpy as jnp
from jax.experimental import pallas as pl
from jax.experimental.pallas import tpu as pltpu


def _vmem_capacity_bytes():
    # Physical VMEM per TensorCore; fall back to the smallest current chip
    # (v7x: 64 MiB) if the query is unavailable.
    try:
        return int(pltpu.get_tpu_info().vmem_capacity_bytes)
    except Exception:
        return 64 * 1024 * 1024


def _pick_tile(total, unit_bytes, target_bytes, min_tile):
    """Largest divisor of `total` (a multiple of `min_tile`, or `total` itself)
    whose footprint `d * unit_bytes` does not exceed `target_bytes`."""
    best = None
    for d in range(1, total + 1):
        if total % d != 0:
            continue
        if d != total and d % min_tile != 0:
            continue
        if d * unit_bytes <= target_bytes:
            best = d
    if best is None:
        best = min_tile if (min_tile <= total and total % min_tile == 0) else total
    return best


# ---------------------------------------------------------------------------
# Fused single-pass kernel: pool + FC + sigmoid + scale on a resident slab.
# ---------------------------------------------------------------------------
def _se_fused_kernel(x_ref, w1_ref, b1_ref, w2_ref, b2_ref, o_ref, *,
                     inv_hw, channels_last):
    x = x_ref[...]                                    # (Bt, C, HW) or (Bt, HW, C)

    # Global average pool, accumulated in f32 (correct for bf16 inputs) without
    # materializing an f32 copy of the slab.
    pool_axis = 1 if channels_last else 2
    pooled = jnp.sum(x, axis=pool_axis, dtype=jnp.float32) * jnp.float32(inv_hw)  # (Bt, C)

    # squeeze = relu(pooled @ W1 + b1): broadcast-mul + reduce (VPU/XLU; the
    # shapes are tiny so the MXU is deliberately not used).
    w1 = w1_ref[...].astype(jnp.float32)              # (C, med)
    b1 = b1_ref[...].astype(jnp.float32)              # (1, med)
    sq = jnp.sum(pooled[:, :, None] * w1[None, :, :], axis=1) + b1    # (Bt, med)
    sq = jnp.maximum(sq, 0.0)

    # excitation = sigmoid(sq @ W2 + b2)
    w2 = w2_ref[...].astype(jnp.float32)              # (med, C)
    b2 = b2_ref[...].astype(jnp.float32)              # (1, C)
    exc = jnp.sum(sq[:, :, None] * w2[None, :, :], axis=1) + b2       # (Bt, C)
    gate = (1.0 / (1.0 + jnp.exp(-exc))).astype(x.dtype)              # (Bt, C)

    # Channel-wise scale of the resident native-dtype slab (no f32 slab temp).
    if channels_last:
        o_ref[...] = x * gate[:, None, :]
    else:
        o_ref[...] = x * gate[:, :, None]


# ---------------------------------------------------------------------------
# Two-pass fallback (large C*H*W, e.g. v7x 64 MiB VMEM): gate in plain XLA,
# then a channel-tiled Pallas scale pass.
# ---------------------------------------------------------------------------
def _scale_kernel(gate_ref, x_ref, o_ref):
    # gate block: (1, Ct, 1); x block: (1, Ct, HW) — broadcast over lanes.
    o_ref[...] = x_ref[...] * gate_ref[...]


def _se_two_pass(x, w1, b1, w2, b2, vmem_budget, donate_x):
    N, C, H, W = x.shape
    HW = H * W
    itemsize = jnp.dtype(x.dtype).itemsize
    x3 = x.reshape(N, C, HW)

    # Pass 1: KB-sized gate math (one extra streaming read of x for the pool).
    pool = jnp.mean(x3, axis=2, dtype=jnp.float32)                        # (N, C)
    sq = jnp.maximum(pool @ w1.astype(jnp.float32) + b1.astype(jnp.float32), 0.0)
    exc = sq @ w2.astype(jnp.float32) + b2.astype(jnp.float32)
    gate = jax.nn.sigmoid(exc).astype(x.dtype).reshape(N, C, 1)           # (N, C, 1)

    # Pass 2: channel-tiled scale; x read once / written once.
    row_bytes = HW * itemsize
    ct = _pick_tile(C, row_bytes, min(4 << 20, vmem_budget // 6), min_tile=8)
    block_bytes = ct * row_bytes
    vmem_limit = min(max(int(4 * block_bytes * 1.3) + (2 << 20), 32 << 20),
                     vmem_budget)

    out = pl.pallas_call(
        _scale_kernel,
        out_shape=jax.ShapeDtypeStruct((N, C, HW), x.dtype),
        grid_spec=pltpu.PrefetchScalarGridSpec(
            num_scalar_prefetch=0,
            grid=(N, C // ct),
            in_specs=[
                pl.BlockSpec((1, ct, 1), lambda n, c: (n, c, 0)),     # gate
                pl.BlockSpec((1, ct, HW), lambda n, c: (n, c, 0)),    # x slab
            ],
            out_specs=pl.BlockSpec((1, ct, HW), lambda n, c: (n, c, 0)),
        ),
        compiler_params=pltpu.CompilerParams(
            dimension_semantics=("parallel", "parallel"),
            vmem_limit_bytes=vmem_limit),
        input_output_aliases=({1: 0} if donate_x else {}),
    )(gate, x3)
    return out.reshape(N, C, H, W)


# ---------------------------------------------------------------------------
# Public wrapper.
# ---------------------------------------------------------------------------
def se_layer(x, w1, b1, w2, b2, *, donate_x=False):
    """SELayer forward.

    x  : (N, C, H, W)
    w1 : (C, med), b1: (med,)   -- squeeze Linear (y = pool @ w1 + b1), ReLU
    w2 : (med, C), b2: (C,)     -- excitation Linear, sigmoid
    donate_x: set True (and donate x at the jit boundary) to reuse x's HBM
              buffer for the output via input_output_aliases.
    """
    N, C, H, W = x.shape
    HW = H * W
    med = w1.shape[1]
    itemsize = jnp.dtype(x.dtype).itemsize

    vmem_cap = _vmem_capacity_bytes()
    vmem_budget = int(vmem_cap * 0.9)      # leave headroom for compiler scratch
    slab_bytes = C * HW * itemsize         # one batch element

    # If even a single-sample slab cannot be double-buffered (in + out) within
    # the VMEM budget (v7x: 64 MiB/TC), use the two-pass split.
    if 5 * slab_bytes > vmem_budget:
        return _se_two_pass(x, w1, b1, w2, b2, vmem_budget, donate_x)

    # Lane-dense resident layout: HW on lanes when 128-aligned, else
    # channel-last when C is 128-aligned (avoids masked vst.msk stores).
    channels_last = (HW % 128 != 0) and (C % 128 == 0)
    # TODO(synk): the NCHW<->NHWC transposes cost an extra HBM pass; if the
    # surrounding model is already channel-last, feed NHWC directly instead.
    if channels_last:
        x3 = jnp.transpose(x, (0, 2, 3, 1)).reshape(N, HW, C)
    else:
        x3 = x.reshape(N, C, HW)           # free, contiguous reshape

    # Pack batch elements per block so each DMA is ~1-4 MiB, capped by VMEM.
    target = min(4 << 20, vmem_budget // 6)
    bt = _pick_tile(N, slab_bytes, target, min_tile=1)
    # Keep >= 2 grid steps when there is real work so v7x megacore can shard
    # the batch axis across both TensorCores.
    if N >= 2 and N // bt == 1 and bt * slab_bytes > (1 << 20):
        bt = _pick_tile(N, slab_bytes, (bt * slab_bytes) // 2, min_tile=1)

    block_shape = (bt, HW, C) if channels_last else (bt, C, HW)
    block_bytes = bt * slab_bytes
    weight_bytes = (C * med + med + med * C + C) * jnp.dtype(w1.dtype).itemsize
    # Explicit scoped-VMEM request: double-buffered in/out blocks +
    # double-buffered weights + small f32 gate temps, with headroom; never
    # below the chip defaults, never above ~90% of physical VMEM.
    vmem_limit = min(
        max(int(4 * block_bytes * 1.3) + 4 * weight_bytes + (2 << 20), 32 << 20),
        vmem_budget)

    kernel = functools.partial(_se_fused_kernel, inv_hw=1.0 / float(HW),
                               channels_last=channels_last)
    b1r = b1.reshape(1, med)
    b2r = b2.reshape(1, C)

    out = pl.pallas_call(
        kernel,
        out_shape=jax.ShapeDtypeStruct(x3.shape, x.dtype),
        grid_spec=pltpu.PrefetchScalarGridSpec(
            num_scalar_prefetch=0,
            grid=(N // bt,),
            in_specs=[
                pl.BlockSpec(block_shape, lambda n: (n, 0, 0)),   # x slab
                pl.BlockSpec((C, med), lambda n: (0, 0)),         # W1
                pl.BlockSpec((1, med), lambda n: (0, 0)),         # b1
                pl.BlockSpec((med, C), lambda n: (0, 0)),         # W2
                pl.BlockSpec((1, C), lambda n: (0, 0)),           # b2
            ],
            out_specs=pl.BlockSpec(block_shape, lambda n: (n, 0, 0)),
        ),
        compiler_params=pltpu.CompilerParams(
            dimension_semantics=("parallel",),
            vmem_limit_bytes=vmem_limit),
        input_output_aliases=({0: 0} if donate_x else {}),
    )(x3, w1, b1r, w2, b2r)

    if channels_last:
        return jnp.transpose(out.reshape(N, H, W, C), (0, 3, 1, 2))
    return out.reshape(N, C, H, W)


if __name__ == "__main__":
    key = jax.random.PRNGKey(0)
    k_x, k_w1, k_b1, k_w2, k_b2 = jax.random.split(key, 5)

    # Small shapes consistent with the module: NCHW activation, SE reduction.
    N, C, H, W = 2, 32, 16, 16
    reduction_ratio = 4
    med = C // reduction_ratio            # num_filters == num_channels == C

    x = jax.random.normal(k_x, (N, C, H, W), dtype=jnp.float32)

    stdv1 = 1.0 / (C ** 0.5)
    w1 = jax.random.uniform(k_w1, (C, med), jnp.float32, -stdv1, stdv1)
    b1 = jax.random.uniform(k_b1, (med,), jnp.float32, -stdv1, stdv1)
    stdv2 = 1.0 / (med ** 0.5)
    w2 = jax.random.uniform(k_w2, (med, C), jnp.float32, -stdv2, stdv2)
    b2 = jax.random.uniform(k_b2, (C,), jnp.float32, -stdv2, stdv2)

    y = jax.block_until_ready(se_layer(x, w1, b1, w2, b2))

    # Pure-JAX reference for the exact module semantics.
    pool = jnp.mean(x, axis=(2, 3))                       # (N, C)
    sq = jnp.maximum(pool @ w1 + b1, 0.0)                 # (N, med)
    exc = jax.nn.sigmoid(sq @ w2 + b2)                    # (N, C)
    ref = x * exc[:, :, None, None]

    assert y.shape == x.shape and y.dtype == x.dtype
    assert jnp.max(jnp.abs(y - ref)) < 1e-5, float(jnp.max(jnp.abs(y - ref)))

    print("KERNEL_OK")
</pallas_src>

<mosaic_0001>
module attributes {stable_mosaic.version = 11 : i64} {
  func.func @_se_fused_kernel(%arg0: i32, %arg1: memref<2x32x256xf32, #tpu.memory_space<vmem>>, %arg2: memref<32x8xf32, #tpu.memory_space<vmem>>, %arg3: memref<1x8xf32, #tpu.memory_space<vmem>>, %arg4: memref<8x32xf32, #tpu.memory_space<vmem>>, %arg5: memref<1x32xf32, #tpu.memory_space<vmem>>, %arg6: memref<2x32x256xf32, #tpu.memory_space<vmem>>) attributes {dimension_semantics = [#tpu.dimension_semantics<parallel>], iteration_bounds = array<i64: 1>, scalar_prefetch = 0 : i64, scratch_operands = 0 : i64, tpu.core_type = #tpu.core_type<tc>, window_params = [{transform_indices = @transform_0, window_bounds = array<i64: 2, 32, 256>}, {pipeline_mode = #tpu.pipeline_mode<synchronous>, transform_indices = @transform_1, window_bounds = array<i64: 32, 8>}, {pipeline_mode = #tpu.pipeline_mode<synchronous>, transform_indices = @transform_2, window_bounds = array<i64: 1, 8>}, {pipeline_mode = #tpu.pipeline_mode<synchronous>, transform_indices = @transform_3, window_bounds = array<i64: 8, 32>}, {pipeline_mode = #tpu.pipeline_mode<synchronous>, transform_indices = @transform_4, window_bounds = array<i64: 1, 32>}, {transform_indices = @transform_5, window_bounds = array<i64: 2, 32, 256>}]} {
    %c0 = arith.constant 0 : index
    %c0_0 = arith.constant 0 : index
    %c0_1 = arith.constant 0 : index
    %0 = vector.load %arg1[%c0, %c0_0, %c0_1] : memref<2x32x256xf32, #tpu.memory_space<vmem>>, vector<2x32x256xf32>
    %cst = arith.constant dense<0.000000e+00> : vector<2x32xf32>
    %1 = vector.multi_reduction <add>, %0, %cst [2] : vector<2x32x256xf32> to vector<2x32xf32>
    %cst_2 = arith.constant 3.906250e-03 : f32
    %2 = vector.broadcast %cst_2 : f32 to vector<2x32xf32>
    %3 = arith.mulf %1, %2 : vector<2x32xf32>
    %c0_3 = arith.constant 0 : index
    %c0_4 = arith.constant 0 : index
    %4 = vector.load %arg2[%c0_3, %c0_4] : memref<32x8xf32, #tpu.memory_space<vmem>>, vector<32x8xf32>
    %c0_5 = arith.constant 0 : index
    %c0_6 = arith.constant 0 : index
    %5 = vector.load %arg3[%c0_5, %c0_6] : memref<1x8xf32, #tpu.memory_space<vmem>>, vector<1x8xf32>
    %6 = vector.shape_cast %3 : vector<2x32xf32> to vector<2x32x1xf32>
    %7 = vector.shape_cast %4 : vector<32x8xf32> to vector<1x32x8xf32>
    %8 = vector.broadcast %6 : vector<2x32x1xf32> to vector<2x32x8xf32>
    %9 = vector.broadcast %7 : vector<1x32x8xf32> to vector<2x32x8xf32>
    %10 = arith.mulf %8, %9 : vector<2x32x8xf32>
    %cst_7 = arith.constant dense<0.000000e+00> : vector<2x8xf32>
    %11 = vector.multi_reduction <add>, %10, %cst_7 [1] : vector<2x32x8xf32> to vector<2x8xf32>
    %12 = vector.broadcast %5 : vector<1x8xf32> to vector<2x8xf32>
    %13 = arith.addf %11, %12 : vector<2x8xf32>
    %cst_8 = arith.constant 0.000000e+00 : f32
    %14 = vector.broadcast %cst_8 : f32 to vector<2x8xf32>
    %15 = arith.maximumf %13, %14 : vector<2x8xf32>
    %c0_9 = arith.constant 0 : index
    %c0_10 = arith.constant 0 : index
    %16 = vector.load %arg4[%c0_9, %c0_10] : memref<8x32xf32, #tpu.memory_space<vmem>>, vector<8x32xf32>
    %c0_11 = arith.constant 0 : index
    %c0_12 = arith.constant 0 : index
    %17 = vector.load %arg5[%c0_11, %c0_12] : memref<1x32xf32, #tpu.memory_space<vmem>>, vector<1x32xf32>
    %18 = vector.shape_cast %15 : vector<2x8xf32> to vector<2x8x1xf32>
    %19 = vector.shape_cast %16 : vector<8x32xf32> to vector<1x8x32xf32>
    %20 = vector.broadcast %18 : vector<2x8x1xf32> to vector<2x8x32xf32>
    %21 = vector.broadcast %19 : vector<1x8x32xf32> to vector<2x8x32xf32>
    %22 = arith.mulf %20, %21 : vector<2x8x32xf32>
    %cst_13 = arith.constant dense<0.000000e+00> : vector<2x32xf32>
    %23 = vector.multi_reduction <add>, %22, %cst_13 [1] : vector<2x8x32xf32> to vector<2x32xf32>
    %24 = vector.broadcast %17 : vector<1x32xf32> to vector<2x32xf32>
    %25 = arith.addf %23, %24 : vector<2x32xf32>
    %cst_14 = arith.constant 0.000000e+00 : f32
    %26 = vector.broadcast %cst_14 : f32 to vector<2x32xf32>
    %27 = arith.subf %26, %25 : vector<2x32xf32>
    %28 = math.exp %27 : vector<2x32xf32>
    %cst_15 = arith.constant 1.000000e+00 : f32
    %29 = vector.broadcast %cst_15 : f32 to vector<2x32xf32>
    %30 = arith.addf %29, %28 : vector<2x32xf32>
    %cst_16 = arith.constant 1.000000e+00 : f32
    %31 = vector.broadcast %cst_16 : f32 to vector<2x32xf32>
    %32 = arith.divf %31, %30 : vector<2x32xf32>
    %33 = vector.shape_cast %32 : vector<2x32xf32> to vector<2x32x1xf32>
    %34 = vector.broadcast %33 : vector<2x32x1xf32> to vector<2x32x256xf32>
    %35 = arith.mulf %0, %34 : vector<2x32x256xf32>
    %c0_17 = arith.constant 0 : index
    %c0_18 = arith.constant 0 : index
    %c0_19 = arith.constant 0 : index
    %36 = vector.load %arg6[%c0_17, %c0_18, %c0_19] : memref<2x32x256xf32, #tpu.memory_space<vmem>>, vector<2x32x256xf32>
    tpu.vector_store %arg6[%c0_17, %c0_18, %c0_19], %35 {strides = array<i32>} : memref<2x32x256xf32, #tpu.memory_space<vmem>>, vector<2x32x256xf32>,
    return
  }
  func.func @transform_0(%arg0: i32) -> (i32, i32, i32) {
    %c0_i32 = arith.constant 0 : i32
    %c0_i32_0 = arith.constant 0 : i32
    %c0_i32_1 = arith.constant 0 : i32
    return %arg0, %c0_i32, %c0_i32_0 : i32, i32, i32
  }
  func.func @transform_1(%arg0: i32) -> (i32, i32) {
    %c0_i32 = arith.constant 0 : i32
    %c0_i32_0 = arith.constant 0 : i32
    %c0_i32_1 = arith.constant 0 : i32
    return %c0_i32, %c0_i32_0 : i32, i32
  }
  func.func @transform_2(%arg0: i32) -> (i32, i32) {
    %c0_i32 = arith.constant 0 : i32
    %c0_i32_0 = arith.constant 0 : i32
    %c0_i32_1 = arith.constant 0 : i32
    return %c0_i32, %c0_i32_0 : i32, i32
  }
  func.func @transform_3(%arg0: i32) -> (i32, i32) {
    %c0_i32 = arith.constant 0 : i32
    %c0_i32_0 = arith.constant 0 : i32
    %c0_i32_1 = arith.constant 0 : i32
    return %c0_i32, %c0_i32_0 : i32, i32
  }
  func.func @transform_4(%arg0: i32) -> (i32, i32) {
    %c0_i32 = arith.constant 0 : i32
    %c0_i32_0 = arith.constant 0 : i32
    %c0_i32_1 = arith.constant 0 : i32
    return %c0_i32, %c0_i32_0 : i32, i32
  }
  func.func @transform_5(%arg0: i32) -> (i32, i32, i32) {
    %c0_i32 = arith.constant 0 : i32
    %c0_i32_0 = arith.constant 0 : i32
    %c0_i32_1 = arith.constant 0 : i32
    return %arg0, %c0_i32, %c0_i32_0 : i32, i32, i32
  }
}

</mosaic_0001>

<llo_original>
// kernel: tpu_custom_call.1
$region0: #{tpu_custom_call.1}
  #allocation0 [shape = 'u32[]', space=smem, size = 0x4, offset = 0x4, fixed_abs, tag = 'smem constant byte address 0x4 - core index']
  #allocation1 [shape = 'u32[144,128]{1,0:T(1,128)}', space=vmem, size = 0x12000, scoped, tag = 'internal scratch']
  %s0 = inlined_call_operand.hbm [shape: f32[2,32,256], index: 0, kind: input, shape index: {}]
  %s1 = inlined_call_operand.vmem [shape: f32[32,8], index: 1, kind: input, shape index: {}]
  %s2 = inlined_call_operand.vmem [shape: f32[1,8], index: 2, kind: input, shape index: {}]
  %s3 = inlined_call_operand.vmem [shape: f32[8,32], index: 3, kind: input, shape index: {}]
  %s4 = inlined_call_operand.vmem [shape: f32[1,32], index: 4, kind: input, shape index: {}]
  %s5 = inlined_call_operand.hbm [shape: f32[2,32,256], index: 5, kind: output, shape index: {}]
  %s6 = sld [smem:[#allocation0]]
  $region34: #{tpu_custom_call.1} parent=0
    _
  %s8 = ssub.s32 1, %s6
  %s9 = scalar_select 0, %s8, %s6
  $region1: #{tpu_custom_call.1} parent=0
    #allocation2 [shape = 'u8[65536]{0}', space=vmem, size = 0x10000, scoped, tag = 'input window, operand 0, single buffered']
    #allocation3 [shape = 's32[1]{0}', space=sflag, size = 0x4, scoped, tag = 'scoped memory for tpu_custom_call.1']
    #allocation4 [shape = 's32[1]{0}', space=sflag, size = 0x4, scoped, tag = 'scoped memory for tpu_custom_call.1']
    #allocation5 [shape = 'u8[65536]{0}', space=vmem, size = 0x10000, scoped, tag = 'output window, operand 0, single buffered']
    %10 = vsyncpa [#allocation3], 0
    %11 = vsyncpa [#allocation4], 0
    // Predicated region
    $region2: #{tpu_custom_call.1} parent=1 // pred_check
      _
    $region3: #{tpu_custom_call.1} parent=1 // pred_check_branch
      %13 = sbr.rel (0) target = $region5
    $region4: #{tpu_custom_call.1} parent=1 // pred_region
      %s15 = ssub.s32 2048, 2048
      %16 = vsyncadd [#allocation3], %s15
      %s17 = sshll.u32 [#allocation2], 4
      %s18 = int_to_ptr.vmem [resolvable:$true] %s17
      %23 = dma.hbm_to_vmem [thread:$0]  %s0, 2048, %s18, [#allocation3], 256, 256, 16
    $region5: #{tpu_custom_call.1} parent=1 // pred_fallthru
      _
    // Predicated region
    $region6: #{tpu_custom_call.1} parent=1 // pred_check
      _
    $region7: #{tpu_custom_call.1} parent=1 // pred_check_branch
      %25 = sbr.rel (0) target = $region9
    $region8: #{tpu_custom_call.1} parent=1 // pred_region
      _
    $region9: #{tpu_custom_call.1} parent=1 // pred_fallthru
      _
    // Predicated region
    $region10: #{tpu_custom_call.1} parent=1 // pred_check
      _
    $region11: #{tpu_custom_call.1} parent=1 // pred_check_branch
      %27 = sbr.rel (0) target = $region13
    $region12: #{tpu_custom_call.1} parent=1 // pred_region
      _
    $region13: #{tpu_custom_call.1} parent=1 // pred_fallthru
      _
    // Predicated region
    $region14: #{tpu_custom_call.1} parent=1 // pred_check
      _
    $region15: #{tpu_custom_call.1} parent=1 // pred_check_branch
      %29 = sbr.rel (0) target = $region17
    $region16: #{tpu_custom_call.1} parent=1 // pred_region
      _
    $region17: #{tpu_custom_call.1} parent=1 // pred_fallthru
      _
    // Predicated region
    $region18: #{tpu_custom_call.1} parent=1 // pred_check
      _
    $region19: #{tpu_custom_call.1} parent=1 // pred_check_branch
      %31 = sbr.rel (0) target = $region21
    $region20: #{tpu_custom_call.1} parent=1 // pred_region
      _
    $region21: #{tpu_custom_call.1} parent=1 // pred_fallthru
      _
    // Predicated region
    $region22: #{tpu_custom_call.1} parent=1 // pred_check
      _
    $region23: #{tpu_custom_call.1} parent=1 // pred_check_branch
      %33 = sbr.rel (0) target = $region25
    $region24: #{tpu_custom_call.1} parent=1 // pred_region
      %34 = dma.done [#allocation3], 2048
    $region25: #{tpu_custom_call.1} parent=1 // pred_fallthru
      _
    %v35 = vld [vmem:[#allocation2] sm:$0xff]
    %v36 = vld [vmem:[#allocation2 + $0x8] sm:$0xff]
    %v37 = vld [vmem:[#allocation2 + $0x10] sm:$0xff]
    %v38 = vld [vmem:[#allocation2 + $0x18] sm:$0xff]
    %v39 = vld [vmem:[#allocation2 + $0x20] sm:$0xff]
    %v40 = vld [vmem:[#allocation2 + $0x28] sm:$0xff]
    %v41 = vld [vmem:[#allocation2 + $0x30] sm:$0xff]
    %v42 = vld [vmem:[#allocation2 + $0x38] sm:$0xff]
    %v43 = vld [vmem:[#allocation2 + $0x40] sm:$0xff]
    %v44 = vld [vmem:[#allocation2 + $0x48] sm:$0xff]
    %v45 = vld [vmem:[#allocation2 + $0x50] sm:$0xff]
    %v46 = vld [vmem:[#allocation2 + $0x58] sm:$0xff]
    %v47 = vld [vmem:[#allocation2 + $0x60] sm:$0xff]
    %v48 = vld [vmem:[#allocation2 + $0x68] sm:$0xff]
    %v49 = vld [vmem:[#allocation2 + $0x70] sm:$0xff]
    %v50 = vld [vmem:[#allocation2 + $0x78] sm:$0xff]
    %v51 = vadd.f32 %v35, %v36
    %52 = vadd.xlane.f32.xlu0 %v51
    %v53 = vpop.xlane.xlu0 %52
    %v54 = vadd.f32 %v37, %v38
    %55 = vadd.xlane.f32.xlu0 %v54
    %v56 = vpop.xlane.xlu0 %55
    %v57 = vadd.f32 %v39, %v40
    %58 = vadd.xlane.f32.xlu0 %v57
    %v59 = vpop.xlane.xlu0 %58
    %v60 = vadd.f32 %v41, %v42
    %61 = vadd.xlane.f32.xlu0 %v60
    %v62 = vpop.xlane.xlu0 %61
    %v63 = vadd.f32 %v43, %v44
    %64 = vadd.xlane.f32.xlu0 %v63
    %v65 = vpop.xlane.xlu0 %64
    %v66 = vadd.f32 %v45, %v46
    %67 = vadd.xlane.f32.xlu0 %v66
    %v68 = vpop.xlane.xlu0 %67
    %v69 = vadd.f32 %v47, %v48
    %70 = vadd.xlane.f32.xlu0 %v69
    %v71 = vpop.xlane.xlu0 %70
    %v72 = vadd.f32 %v49, %v50
    %73 = vadd.xlane.f32.xlu0 %v72
    %v74 = vpop.xlane.xlu0 %73
    %v75 = vmul.f32 %v53, 0.00390625
    %v76 = vmul.f32 %v56, 0.00390625
    %v77 = vmul.f32 %v59, 0.00390625
    %v78 = vmul.f32 %v62, 0.00390625
    %v79 = vmul.f32 %v65, 0.00390625
    %v80 = vmul.f32 %v68, 0.00390625
    %v81 = vmul.f32 %v71, 0.00390625
    %v82 = vmul.f32 %v74, 0.00390625
    %v83 = vld [vmem:[%s1] sm:$0xff]
    %v84 = vld [vmem:[%s1 + $0x8] sm:$0xff]
    %v85 = vld [vmem:[%s1 + $0x10] sm:$0xff]
    %v86 = vld [vmem:[%s1 + $0x18] sm:$0xff]
    %v87 = vld [vmem:[%s2] sm:$0x1]
    %v88 = vmul.f32 %v75, %v83
    %v89 = vmul.f32 %v76, %v84
    %v90 = vmul.f32 %v77, %v85
    %v91 = vmul.f32 %v78, %v86
    %v92 = vmul.f32 %v79, %v83
    %v93 = vmul.f32 %v80, %v84
    %v94 = vmul.f32 %v81, %v85
    %v95 = vmul.f32 %v82, %v86
    %vm96 = vcmask 64512
    %v97 = vsel %vm96, %v88, 0.0
    %v98 = vsel %vm96, %v89, 0.0
    %v99 = vadd.f32 %v97, %v98
    %v100 = vsel %vm96, %v90, 0.0
    %v101 = vadd.f32 %v99, %v100
    %v102 = vsel %vm96, %v91, 0.0
    %v103 = vadd.f32 %v101, %v102
    %v104 = vrot.slane %v103, 4
    %v105 = vadd.f32 %v103, %v104
    %v106 = vrot.slane %v105, 2
    %v107 = vadd.f32 %v105, %v106
    %v108 = vrot.slane %v107, 1
    %v109 = vadd.f32 %v107, %v108
    %v110 = vsel %vm96, %v92, 0.0
    %v111 = vsel %vm96, %v93, 0.0
    %v112 = vadd.f32 %v110, %v111
    %v113 = vsel %vm96, %v94, 0.0
    %v114 = vadd.f32 %v112, %v113
    %v115 = vsel %vm96, %v95, 0.0
    %v116 = vadd.f32 %v114, %v115
    %v117 = vrot.slane %v116, 4
    %v118 = vadd.f32 %v116, %v117
    %v119 = vrot.slane %v118, 2
    %v120 = vadd.f32 %v118, %v119
    %v121 = vrot.slane %v120, 1
    %v122 = vadd.f32 %v120, %v121
    %v124 = vlaneseq
    %v125 = vshrl.u32 %v124, 7
    %v126 = vsub.s32 0, %v125
    %v127 = vrot.slane %v87, %v126
    %v129 = vadd.f32 %v109, %v127
    %v130 = vadd.f32 %v122, %v127
    %v131 = vmax.f32 %v129, 0.0
    %v132 = vmax.f32 %v130, 0.0
    %v133 = vld [vmem:[%s3] sm:$0xff]
    %v134 = vld [vmem:[%s4] sm:$0x1]
    %v135 = vlaneseq
    %v136 = vshrl.u32 %v135, 7
    %v137 = vsub.s32 0, %v136
    %v138 = vrot.slane %v131, %v137
    %140 = vbcast.lane.b32.xlu0 %v138, 256
    %v141 = vpop.permute.xlu0 %140
    %v142 = vlaneseq
    %v143 = vshrl.u32 %v142, 7
    %v144 = vsub.s32 0, %v143
    %v145 = vrot.slane %v132, %v144
    %147 = vbcast.lane.b32.xlu0 %v145, 256
    %v148 = vpop.permute.xlu0 %147
    %v149 = vmul.f32 %v141, %v133
    %v150 = vmul.f32 %v148, %v133
    %vm151 = vcmask 261120
    %v152 = vsel %vm151, %v149, 0.0
    %v153 = vrot.slane %v152, 4
    %v154 = vadd.f32 %v152, %v153
    %v155 = vrot.slane %v154, 2
    %v156 = vadd.f32 %v154, %v155
    %v157 = vrot.slane %v156, 1
    %v158 = vadd.f32 %v156, %v157
    %v159 = vsel %vm151, %v150, 0.0
    %v160 = vrot.slane %v159, 4
    %v161 = vadd.f32 %v159, %v160
    %v162 = vrot.slane %v161, 2
    %v163 = vadd.f32 %v161, %v162
    %v164 = vrot.slane %v163, 1
    %v165 = vadd.f32 %v163, %v164
    %v167 = vlaneseq
    %v168 = vshrl.u32 %v167, 7
    %v169 = vsub.s32 0, %v168
    %v170 = vrot.slane %v134, %v169
    %v172 = vadd.f32 %v158, %v170
    %v173 = vadd.f32 %v165, %v170
    %v174 = vsub.f32 0.0, %v172
    %v175 = vsub.f32 0.0, %v173
    %v176 = vmul.f32 %v174, 1.442695
    %v177 = vpow.pop %v176
    %v178 = vmul.f32 %v175, 1.442695
    %v179 = vpow.pop %v178
    %v180 = vadd.f32 %v177, 1.0
    %v181 = vadd.f32 %v179, 1.0
    %v182 = vrcp.pop %v180
    %v183 = vmul.f32 1.0, %v182
    %v184 = vrcp.pop %v181
    %v185 = vmul.f32 1.0, %v184
    %v186 = vlaneseq
    %v187 = vshrl.u32 %v186, 7
    %v188 = vsub.s32 0, %v187
    %v189 = vrot.slane %v183, %v188
    %191 = vbcast.lane.b32.xlu0 %v189, 256
    %v192 = vpop.permute.xlu0 %191
    %s194 = sor.u32 256, 8
    %195 = vbcast.lane.b32.xlu0 %v189, %s194
    %v196 = vpop.permute.xlu0 %195
    %s198 = sor.u32 256, 16
    %199 = vbcast.lane.b32.xlu0 %v189, %s198
    %v200 = vpop.permute.xlu0 %199
    %s202 = sor.u32 256, 24
    %203 = vbcast.lane.b32.xlu0 %v189, %s202
    %v204 = vpop.permute.xlu0 %203
    %v205 = vlaneseq
    %v206 = vshrl.u32 %v205, 7
    %v207 = vsub.s32 0, %v206
    %v208 = vrot.slane %v185, %v207
    %210 = vbcast.lane.b32.xlu0 %v208, 256
    %v211 = vpop.permute.xlu0 %210
    %s213 = sor.u32 256, 8
    %214 = vbcast.lane.b32.xlu0 %v208, %s213
    %v215 = vpop.permute.xlu0 %214
    %s217 = sor.u32 256, 16
    %218 = vbcast.lane.b32.xlu0 %v208, %s217
    %v219 = vpop.permute.xlu0 %218
    %s221 = sor.u32 256, 24
    %222 = vbcast.lane.b32.xlu0 %v208, %s221
    %v223 = vpop.permute.xlu0 %222
    %v224 = vmul.f32 %v35, %v192
    %v225 = vmul.f32 %v36, %v192
    %v226 = vmul.f32 %v37, %v196
    %v227 = vmul.f32 %v38, %v196
    %v228 = vmul.f32 %v39, %v200
    %v229 = vmul.f32 %v40, %v200
    %v230 = vmul.f32 %v41, %v204
    %v231 = vmul.f32 %v42, %v204
    %v232 = vmul.f32 %v43, %v211
    %v233 = vmul.f32 %v44, %v211
    %v234 = vmul.f32 %v45, %v215
    %v235 = vmul.f32 %v46, %v215
    %v236 = vmul.f32 %v47, %v219
    %v237 = vmul.f32 %v48, %v219
    %v238 = vmul.f32 %v49, %v223
    %v239 = vmul.f32 %v50, %v223
    %240 = vst [vmem:[#allocation5] sm:$0xff] %v224
    %241 = vst [vmem:[#allocation5 + $0x8] sm:$0xff] %v225
    %242 = vst [vmem:[#allocation5 + $0x10] sm:$0xff] %v226
    %243 = vst [vmem:[#allocation5 + $0x18] sm:$0xff] %v227
    %244 = vst [vmem:[#allocation5 + $0x20] sm:$0xff] %v228
    %245 = vst [vmem:[#allocation5 + $0x28] sm:$0xff] %v229
    %246 = vst [vmem:[#allocation5 + $0x30] sm:$0xff] %v230
    %247 = vst [vmem:[#allocation5 + $0x38] sm:$0xff] %v231
    %248 = vst [vmem:[#allocation5 + $0x40] sm:$0xff] %v232
    %249 = vst [vmem:[#allocation5 + $0x48] sm:$0xff] %v233
    %250 = vst [vmem:[#allocation5 + $0x50] sm:$0xff] %v234
    %251 = vst [vmem:[#allocation5 + $0x58] sm:$0xff] %v235
    %252 = vst [vmem:[#allocation5 + $0x60] sm:$0xff] %v236
    %253 = vst [vmem:[#allocation5 + $0x68] sm:$0xff] %v237
    %254 = vst [vmem:[#allocation5 + $0x70] sm:$0xff] %v238
    %255 = vst [vmem:[#allocation5 + $0x78] sm:$0xff] %v239
    // Predicated region
    $region26: #{tpu_custom_call.1} parent=1 // pred_check
      _
    $region27: #{tpu_custom_call.1} parent=1 // pred_check_branch
      %257 = sbr.rel (0) target = $region29
    $region28: #{tpu_custom_call.1} parent=1 // pred_region
      %s259 = ssub.s32 2048, 2048
      %260 = vsyncadd [#allocation4], %s259
      %s261 = sshll.u32 [#allocation5], 4
      %s262 = int_to_ptr.vmem [resolvable:$true] %s261
      %267 = dma.vmem_to_hbm [thread:$0]  %s262, 2048, %s5, [#allocation4], 256, 256, 16
    $region29: #{tpu_custom_call.1} parent=1 // pred_fallthru
      _
    // Predicated region
    $region30: #{tpu_custom_call.1} parent=1 // pred_check
      _
    $region31: #{tpu_custom_call.1} parent=1 // pred_check_branch
      %269 = sbr.rel (0) target = $region33
    $region32: #{tpu_custom_call.1} parent=1 // pred_region
      %270 = dma.done [#allocation4], 2048
    $region33: #{tpu_custom_call.1} parent=1 // pred_fallthru
      _
    %271 = vsyncpa [#allocation3], 1
    %272 = vsyncpa [#allocation4], 1

</llo_original>
